<compile_context>
chip_gen: v7x
topology: tpu7x:2x2x1
jax: 0.10.0
libtpu: 0.0.40
codegen_flags: <defaults>
</compile_context>

<pallas_src>
import functools

import jax
import jax.numpy as jnp
from jax import lax
from jax.experimental import pallas as pl
from jax.experimental.pallas import tpu as pltpu
import numpy as np

N, CIN, H, W = 2, 4, 16, 16
COUT = CIN          # BasicBlock with downsample=None requires planes == inplanes
CP = 8              # channels zero-padded to one full sublane tile
KP = 10             # 3x3 = 9 taps padded to 10 so bf16 im2col stores are 16-row aligned
EPS = 1e-5


def basic_block_kernel(x_ref, w1_ref, t1_ref, w2_ref, t2_ref, out_ref, col_ref,
                       *, height, width):
    """Fused BasicBlock forward in channel-major (C, N*H*W) layout.

    x_ref  : (CP, NHW)      channel-padded input, lanes = flattened (n, y, x)
    w1_ref : (CP, KP*CP)    conv1 weights * BN1 scale (bf16), k = tap*CP + cin
    t1_ref : (CP, 1)        folded BN1 shift (includes conv1 bias)
    w2_ref : (CP, KP*CP)    conv2 weights * BN2 scale (bf16)
    t2_ref : (CP, 1)        folded BN2 shift (includes conv2 bias)
    out_ref: (CP, NHW)
    col_ref: (KP*CP, NHW)   bf16 im2col scratch, reused by both convolutions
    """
    cp, nf = x_ref.shape

    # Per-lane output coordinates (computed once, shared by both convs).
    # H and W are powers of two here -> shifts/ands instead of div/mod.
    f = lax.broadcasted_iota(jnp.int32, (1, nf), 1)
    if (width & (width - 1)) == 0 and (height & (height - 1)) == 0:
        xx = f & (width - 1)
        yy = (f >> (width.bit_length() - 1)) & (height - 1)
    else:
        hw = height * width
        xx = f % width
        yy = (f % hw) // width

    # Border-validity masks per offset. The lane rolls below wrap circularly
    # across row/image boundaries of the flattened (n, y, x) axis; every
    # wrapped lane is killed by these masks because the whole image lives in
    # a single row-aligned tile (grid=()). Keep tiles row-aligned if a
    # spatial grid is ever added.
    y_ok = {-1: yy >= 1, 0: None, 1: yy <= height - 2}
    x_ok = {-1: xx >= 1, 0: None, 1: xx <= width - 2}
    taps = []
    for dy in (-1, 0, 1):
        for dx in (-1, 0, 1):
            m = y_ok[dy]
            if x_ok[dx] is not None:
                m = x_ok[dx] if m is None else (m & x_ok[dx])
            taps.append((m, (-(dy * width + dx)) % nf))

    zero_f = jnp.zeros((cp, nf), jnp.float32)   # hoisted, shared by all selects

    def fill_cols(v):
        # v: (cp, nf) f32 activations. Writes the (KP*cp, nf) bf16 im2col
        # patch into col_ref. Taps are emitted in pairs so every store is a
        # full 16-sublane (native bf16 packing) block; tap 9 is zero padding.
        def piece(t):
            if t >= len(taps):
                return zero_f
            m, s = taps[t]
            shifted = v if s == 0 else pltpu.roll(v, shift=s, axis=1)
            return shifted if m is None else jnp.where(m, shifted, zero_f)

        for t in range(0, KP, 2):
            blk = jnp.concatenate([piece(t), piece(t + 1)], axis=0)
            col_ref[pl.ds(t * cp, 2 * cp), :] = blk.astype(jnp.bfloat16)

    # conv1 (BN1 scale already folded into w1) -> shift -> ReLU
    fill_cols(x_ref[...])
    a1 = jnp.dot(w1_ref[...], col_ref[...], preferred_element_type=jnp.float32)
    h1 = jnp.maximum(a1 + t1_ref[...], 0.0)

    # conv2 -> shift -> residual add -> ReLU (identity re-read here, not held)
    fill_cols(h1)
    a2 = jnp.dot(w2_ref[...], col_ref[...], preferred_element_type=jnp.float32)
    out_ref[...] = jnp.maximum(a2 + t2_ref[...] + x_ref[...], 0.0)


def fold_bn(conv_bias, gamma, beta, run_mean, run_var, eps=EPS):
    scale = gamma / jnp.sqrt(run_var + eps)
    shift = (conv_bias - run_mean) * scale + beta
    return scale, shift


def _pack_weights(w_oihw, scale, cp, kp):
    """torch OIHW (cout,cin,3,3) * per-out-channel BN scale -> (cp, kp*cp) bf16.

    Column index k = tap*cp + cin with tap = (dy+1)*3 + (dx+1); taps 9..kp-1
    are zero padding (matching the padded im2col scratch).
    """
    cout, cin, kh, kw = w_oihw.shape
    w = w_oihw.astype(jnp.float32) * scale.astype(jnp.float32)[:, None, None, None]
    wt = jnp.transpose(w, (2, 3, 1, 0))                       # (kh, kw, cin, cout)
    wt = jnp.pad(wt, ((0, 0), (0, 0), (0, cp - cin), (0, cp - cout)))
    packed = jnp.transpose(wt, (3, 0, 1, 2)).reshape(cp, kh * kw * cp)
    packed = jnp.pad(packed, ((0, 0), (0, (kp - kh * kw) * cp)))
    return packed.astype(jnp.bfloat16)


def _pad_col(v, cp):
    c = v.shape[0]
    return jnp.pad(v.astype(jnp.float32), (0, cp - c)).reshape(cp, 1)


def prepare_params(params):
    """One-time packing (BN fold + weight relayout), kept off the hot path."""
    (w1, b1, g1, be1, rm1, rv1, w2, b2, g2, be2, rm2, rv2) = params
    s1, t1 = fold_bn(b1, g1, be1, rm1, rv1)
    s2, t2 = fold_bn(b2, g2, be2, rm2, rv2)
    return (_pack_weights(w1, s1, CP, KP), _pad_col(t1, CP),
            _pack_weights(w2, s2, CP, KP), _pad_col(t2, CP))


@jax.jit
def basic_block_forward(x_nchw, packed):
    w1p, t1, w2p, t2 = packed
    n, c, h, w = x_nchw.shape
    # This BasicBlock instance has stride=1 and downsample=None => planes == inplanes.
    assert c <= CP
    nhw = n * h * w
    assert nhw % 128 == 0, "flattened spatial dim must be lane-aligned"

    # NCHW -> channel-major (C, N*H*W), zero-pad channels to CP.
    x_cm = jnp.transpose(x_nchw.astype(jnp.float32), (1, 0, 2, 3)).reshape(c, nhw)
    x_cm = jnp.pad(x_cm, ((0, CP - c), (0, 0)))

    kernel = functools.partial(basic_block_kernel, height=h, width=w)
    out_cm = pl.pallas_call(
        kernel,
        out_shape=jax.ShapeDtypeStruct((CP, nhw), jnp.float32),
        in_specs=[pl.BlockSpec(memory_space=pltpu.MemorySpace.VMEM)] * 5,
        out_specs=pl.BlockSpec(memory_space=pltpu.MemorySpace.VMEM),
        scratch_shapes=[pltpu.VMEM((KP * CP, nhw), jnp.bfloat16)],
    )(x_cm, w1p, t1, w2p, t2)

    out = out_cm[:c].reshape(c, n, h, w)
    return jnp.transpose(out, (1, 0, 2, 3))  # back to NCHW


def reference_forward(x_nchw, params):
    """Pure-JAX (XLA, full-f32) reference matching torch eval-mode semantics."""
    (w1, b1, g1, be1, rm1, rv1, w2, b2, g2, be2, rm2, rv2) = params
    x = jnp.transpose(x_nchw, (0, 2, 3, 1)).astype(jnp.float32)
    w1h = jnp.transpose(w1, (2, 3, 1, 0)).astype(jnp.float32)
    w2h = jnp.transpose(w2, (2, 3, 1, 0)).astype(jnp.float32)
    dn = ("NHWC", "HWIO", "NHWC")
    hp = lax.Precision.HIGHEST

    y = lax.conv_general_dilated(x, w1h, (1, 1), "SAME", dimension_numbers=dn,
                                 precision=hp)
    y = y + b1
    y = (y - rm1) / jnp.sqrt(rv1 + EPS) * g1 + be1
    y = jnp.maximum(y, 0.0)

    y = lax.conv_general_dilated(y, w2h, (1, 1), "SAME", dimension_numbers=dn,
                                 precision=hp)
    y = y + b2
    y = (y - rm2) / jnp.sqrt(rv2 + EPS) * g2 + be2

    y = jnp.maximum(y + x, 0.0)
    return jnp.transpose(y, (0, 3, 1, 2))


def init_params(key):
    k1, k2, k3, k4, k5 = jax.random.split(key, 5)
    fan_in1 = CIN * 9
    fan_in2 = COUT * 9
    bound1 = 1.0 / np.sqrt(fan_in1)
    bound2 = 1.0 / np.sqrt(fan_in2)
    w1 = jax.random.uniform(k1, (COUT, CIN, 3, 3), jnp.float32, -bound1, bound1)
    b1 = jax.random.uniform(k2, (COUT,), jnp.float32, -bound1, bound1)
    w2 = jax.random.uniform(k3, (COUT, COUT, 3, 3), jnp.float32, -bound2, bound2)
    b2 = jax.random.uniform(k4, (COUT,), jnp.float32, -bound2, bound2)
    # BatchNorm2d defaults: weight=1, bias=0, running_mean=0, running_var=1
    g1 = jnp.ones((COUT,), jnp.float32)
    be1 = jnp.zeros((COUT,), jnp.float32)
    rm1 = jnp.zeros((COUT,), jnp.float32)
    rv1 = jnp.ones((COUT,), jnp.float32)
    g2 = jnp.ones((COUT,), jnp.float32)
    be2 = jnp.zeros((COUT,), jnp.float32)
    rm2 = jnp.zeros((COUT,), jnp.float32)
    rv2 = jnp.ones((COUT,), jnp.float32)
    return (w1, b1, g1, be1, rm1, rv1, w2, b2, g2, be2, rm2, rv2), k5


if __name__ == "__main__":
    key = jax.random.PRNGKey(0)
    params, key = init_params(key)
    x = jax.random.normal(key, (N, CIN, H, W), jnp.float32)  # NCHW like PyTorch

    packed = prepare_params(params)   # one-time pack, off the per-call hot path
    out = jax.block_until_ready(basic_block_forward(x, packed))

    ref = jax.block_until_ready(reference_forward(x, params))
    # bf16 MXU operands (per perf review) vs. an exact-f32 reference =>
    # tolerance sized for two chained bf16 convolutions (observed error ~1e-3,
    # worst-case bound well under 2e-2 at these magnitudes).
    np.testing.assert_allclose(np.asarray(out), np.asarray(ref),
                               rtol=2e-2, atol=2e-2)
    assert out.shape == (N, CIN, H, W)
    print("KERNEL_OK")
</pallas_src>

<mosaic_0001>
module attributes {stable_mosaic.version = 11 : i64} {
  func.func @basic_block_kernel(%arg0: memref<8x512xf32, #tpu.memory_space<vmem>>, %arg1: memref<8x80xbf16, #tpu.memory_space<vmem>>, %arg2: memref<8x1xf32, #tpu.memory_space<vmem>>, %arg3: memref<8x80xbf16, #tpu.memory_space<vmem>>, %arg4: memref<8x1xf32, #tpu.memory_space<vmem>>, %arg5: memref<8x512xf32, #tpu.memory_space<vmem>>, %arg6: memref<80x512xbf16, #tpu.memory_space<vmem>>) attributes {dimension_semantics = [], scalar_prefetch = 0 : i64, scratch_operands = 1 : i64, tpu.core_type = #tpu.core_type<tc>} {
    %0 = tpu.iota {dimensions = array<i32: 1>} : vector<1x512xi32>
    %c15_i32 = arith.constant 15 : i32
    %1 = vector.broadcast %c15_i32 : i32 to vector<1x512xi32>
    %2 = arith.andi %0, %1 : vector<1x512xi32>
    %c4_i32 = arith.constant 4 : i32
    %3 = vector.broadcast %c4_i32 : i32 to vector<1x512xi32>
    %4 = arith.shrsi %0, %3 : vector<1x512xi32>
    %c15_i32_0 = arith.constant 15 : i32
    %5 = vector.broadcast %c15_i32_0 : i32 to vector<1x512xi32>
    %6 = arith.andi %4, %5 : vector<1x512xi32>
    %c1_i32 = arith.constant 1 : i32
    %7 = vector.broadcast %c1_i32 : i32 to vector<1x512xi32>
    %8 = arith.cmpi sge, %6, %7 : vector<1x512xi32>
    %c14_i32 = arith.constant 14 : i32
    %9 = vector.broadcast %c14_i32 : i32 to vector<1x512xi32>
    %10 = arith.cmpi sle, %6, %9 : vector<1x512xi32>
    %c1_i32_1 = arith.constant 1 : i32
    %11 = vector.broadcast %c1_i32_1 : i32 to vector<1x512xi32>
    %12 = arith.cmpi sge, %2, %11 : vector<1x512xi32>
    %c14_i32_2 = arith.constant 14 : i32
    %13 = vector.broadcast %c14_i32_2 : i32 to vector<1x512xi32>
    %14 = arith.cmpi sle, %2, %13 : vector<1x512xi32>
    %15 = arith.andi %8, %12 : vector<1x512xi1>
    %16 = arith.andi %8, %14 : vector<1x512xi1>
    %17 = arith.andi %10, %12 : vector<1x512xi1>
    %18 = arith.andi %10, %14 : vector<1x512xi1>
    %cst = arith.constant 0.000000e+00 : f32
    %19 = vector.broadcast %cst : f32 to vector<8x512xf32>
    %c0 = arith.constant 0 : index
    %c0_3 = arith.constant 0 : index
    %20 = vector.load %arg0[%c0, %c0_3] : memref<8x512xf32, #tpu.memory_space<vmem>>, vector<8x512xf32>
    %c17_i32 = arith.constant 17 : i32
    %21 = tpu.dynamic_rotate %20 by %c17_i32 dim 1 : vector<8x512xf32>, i32 -> vector<8x512xf32>
    %22 = vector.shape_cast %15 : vector<1x512xi1> to vector<1x512xi1>
    %23 = vector.broadcast %22 : vector<1x512xi1> to vector<8x512xi1>
    %24 = arith.select %23, %21, %19 : vector<8x512xi1>, vector<8x512xf32>
    %c16_i32 = arith.constant 16 : i32
    %25 = tpu.dynamic_rotate %20 by %c16_i32 dim 1 : vector<8x512xf32>, i32 -> vector<8x512xf32>
    %26 = vector.shape_cast %8 : vector<1x512xi1> to vector<1x512xi1>
    %27 = vector.broadcast %26 : vector<1x512xi1> to vector<8x512xi1>
    %28 = arith.select %27, %25, %19 : vector<8x512xi1>, vector<8x512xf32>
    %29 = tpu.concatenate %24, %28 in 0 : vector<8x512xf32>, vector<8x512xf32> -> vector<16x512xf32>
    %30 = arith.truncf %29 : vector<16x512xf32> to vector<16x512xbf16>
    %c0_4 = arith.constant 0 : index
    %c0_5 = arith.constant 0 : index
    %31 = vector.load %arg6[%c0_4, %c0_5] : memref<80x512xbf16, #tpu.memory_space<vmem>>, vector<16x512xbf16>
    tpu.vector_store %arg6[%c0_4, %c0_5], %30 {strides = array<i32>} : memref<80x512xbf16, #tpu.memory_space<vmem>>, vector<16x512xbf16>,
    %c15_i32_6 = arith.constant 15 : i32
    %32 = tpu.dynamic_rotate %20 by %c15_i32_6 dim 1 : vector<8x512xf32>, i32 -> vector<8x512xf32>
    %33 = vector.shape_cast %16 : vector<1x512xi1> to vector<1x512xi1>
    %34 = vector.broadcast %33 : vector<1x512xi1> to vector<8x512xi1>
    %35 = arith.select %34, %32, %19 : vector<8x512xi1>, vector<8x512xf32>
    %c1_i32_7 = arith.constant 1 : i32
    %36 = tpu.dynamic_rotate %20 by %c1_i32_7 dim 1 : vector<8x512xf32>, i32 -> vector<8x512xf32>
    %37 = vector.shape_cast %12 : vector<1x512xi1> to vector<1x512xi1>
    %38 = vector.broadcast %37 : vector<1x512xi1> to vector<8x512xi1>
    %39 = arith.select %38, %36, %19 : vector<8x512xi1>, vector<8x512xf32>
    %40 = tpu.concatenate %35, %39 in 0 : vector<8x512xf32>, vector<8x512xf32> -> vector<16x512xf32>
    %41 = arith.truncf %40 : vector<16x512xf32> to vector<16x512xbf16>
    %c16 = arith.constant 16 : index
    %c0_8 = arith.constant 0 : index
    %42 = vector.load %arg6[%c16, %c0_8] : memref<80x512xbf16, #tpu.memory_space<vmem>>, vector<16x512xbf16>
    tpu.vector_store %arg6[%c16, %c0_8], %41 {strides = array<i32>} : memref<80x512xbf16, #tpu.memory_space<vmem>>, vector<16x512xbf16>,
    %c511_i32 = arith.constant 511 : i32
    %43 = tpu.dynamic_rotate %20 by %c511_i32 dim 1 : vector<8x512xf32>, i32 -> vector<8x512xf32>
    %44 = vector.shape_cast %14 : vector<1x512xi1> to vector<1x512xi1>
    %45 = vector.broadcast %44 : vector<1x512xi1> to vector<8x512xi1>
    %46 = arith.select %45, %43, %19 : vector<8x512xi1>, vector<8x512xf32>
    %47 = tpu.concatenate %20, %46 in 0 : vector<8x512xf32>, vector<8x512xf32> -> vector<16x512xf32>
    %48 = arith.truncf %47 : vector<16x512xf32> to vector<16x512xbf16>
    %c32 = arith.constant 32 : index
    %c0_9 = arith.constant 0 : index
    %49 = vector.load %arg6[%c32, %c0_9] : memref<80x512xbf16, #tpu.memory_space<vmem>>, vector<16x512xbf16>
    tpu.vector_store %arg6[%c32, %c0_9], %48 {strides = array<i32>} : memref<80x512xbf16, #tpu.memory_space<vmem>>, vector<16x512xbf16>,
    %c497_i32 = arith.constant 497 : i32
    %50 = tpu.dynamic_rotate %20 by %c497_i32 dim 1 : vector<8x512xf32>, i32 -> vector<8x512xf32>
    %51 = vector.shape_cast %17 : vector<1x512xi1> to vector<1x512xi1>
    %52 = vector.broadcast %51 : vector<1x512xi1> to vector<8x512xi1>
    %53 = arith.select %52, %50, %19 : vector<8x512xi1>, vector<8x512xf32>
    %c496_i32 = arith.constant 496 : i32
    %54 = tpu.dynamic_rotate %20 by %c496_i32 dim 1 : vector<8x512xf32>, i32 -> vector<8x512xf32>
    %55 = vector.shape_cast %10 : vector<1x512xi1> to vector<1x512xi1>
    %56 = vector.broadcast %55 : vector<1x512xi1> to vector<8x512xi1>
    %57 = arith.select %56, %54, %19 : vector<8x512xi1>, vector<8x512xf32>
    %58 = tpu.concatenate %53, %57 in 0 : vector<8x512xf32>, vector<8x512xf32> -> vector<16x512xf32>
    %59 = arith.truncf %58 : vector<16x512xf32> to vector<16x512xbf16>
    %c48 = arith.constant 48 : index
    %c0_10 = arith.constant 0 : index
    %60 = vector.load %arg6[%c48, %c0_10] : memref<80x512xbf16, #tpu.memory_space<vmem>>, vector<16x512xbf16>
    tpu.vector_store %arg6[%c48, %c0_10], %59 {strides = array<i32>} : memref<80x512xbf16, #tpu.memory_space<vmem>>, vector<16x512xbf16>,
    %c495_i32 = arith.constant 495 : i32
    %61 = tpu.dynamic_rotate %20 by %c495_i32 dim 1 : vector<8x512xf32>, i32 -> vector<8x512xf32>
    %62 = vector.shape_cast %18 : vector<1x512xi1> to vector<1x512xi1>
    %63 = vector.broadcast %62 : vector<1x512xi1> to vector<8x512xi1>
    %64 = arith.select %63, %61, %19 : vector<8x512xi1>, vector<8x512xf32>
    %65 = tpu.concatenate %64, %19 in 0 : vector<8x512xf32>, vector<8x512xf32> -> vector<16x512xf32>
    %66 = arith.truncf %65 : vector<16x512xf32> to vector<16x512xbf16>
    %c64 = arith.constant 64 : index
    %c0_11 = arith.constant 0 : index
    %67 = vector.load %arg6[%c64, %c0_11] : memref<80x512xbf16, #tpu.memory_space<vmem>>, vector<16x512xbf16>
    tpu.vector_store %arg6[%c64, %c0_11], %66 {strides = array<i32>} : memref<80x512xbf16, #tpu.memory_space<vmem>>, vector<16x512xbf16>,
    %c0_12 = arith.constant 0 : index
    %c0_13 = arith.constant 0 : index
    %68 = vector.load %arg1[%c0_12, %c0_13] : memref<8x80xbf16, #tpu.memory_space<vmem>>, vector<8x80xbf16>
    %c0_14 = arith.constant 0 : index
    %c0_15 = arith.constant 0 : index
    %69 = vector.load %arg6[%c0_14, %c0_15] : memref<80x512xbf16, #tpu.memory_space<vmem>>, vector<80x512xbf16>
    %cst_16 = arith.constant dense<0.000000e+00> : vector<8x512xf32>
    %70 = tpu.matmul %68, %69, %cst_16 {dimension_numbers = #tpu.dot_dimension_numbers<[1], [0], [0], [1], [0, 0, 1, 1], [], []>} : vector<8x80xbf16>, vector<80x512xbf16>, vector<8x512xf32> -> vector<8x512xf32>
    %c0_17 = arith.constant 0 : index
    %c0_18 = arith.constant 0 : index
    %71 = vector.load %arg2[%c0_17, %c0_18] : memref<8x1xf32, #tpu.memory_space<vmem>>, vector<8x1xf32>
    %72 = vector.broadcast %71 : vector<8x1xf32> to vector<8x512xf32>
    %73 = arith.addf %70, %72 : vector<8x512xf32>
    %cst_19 = arith.constant 0.000000e+00 : f32
    %74 = vector.broadcast %cst_19 : f32 to vector<8x512xf32>
    %75 = arith.maximumf %73, %74 : vector<8x512xf32>
    %c17_i32_20 = arith.constant 17 : i32
    %76 = tpu.dynamic_rotate %75 by %c17_i32_20 dim 1 : vector<8x512xf32>, i32 -> vector<8x512xf32>
    %77 = vector.shape_cast %15 : vector<1x512xi1> to vector<1x512xi1>
    %78 = vector.broadcast %77 : vector<1x512xi1> to vector<8x512xi1>
    %79 = arith.select %78, %76, %19 : vector<8x512xi1>, vector<8x512xf32>
    %c16_i32_21 = arith.constant 16 : i32
    %80 = tpu.dynamic_rotate %75 by %c16_i32_21 dim 1 : vector<8x512xf32>, i32 -> vector<8x512xf32>
    %81 = vector.shape_cast %8 : vector<1x512xi1> to vector<1x512xi1>
    %82 = vector.broadcast %81 : vector<1x512xi1> to vector<8x512xi1>
    %83 = arith.select %82, %80, %19 : vector<8x512xi1>, vector<8x512xf32>
    %84 = tpu.concatenate %79, %83 in 0 : vector<8x512xf32>, vector<8x512xf32> -> vector<16x512xf32>
    %85 = arith.truncf %84 : vector<16x512xf32> to vector<16x512xbf16>
    %c0_22 = arith.constant 0 : index
    %c0_23 = arith.constant 0 : index
    %86 = vector.load %arg6[%c0_22, %c0_23] : memref<80x512xbf16, #tpu.memory_space<vmem>>, vector<16x512xbf16>
    tpu.vector_store %arg6[%c0_22, %c0_23], %85 {strides = array<i32>} : memref<80x512xbf16, #tpu.memory_space<vmem>>, vector<16x512xbf16>,
    %c15_i32_24 = arith.constant 15 : i32
    %87 = tpu.dynamic_rotate %75 by %c15_i32_24 dim 1 : vector<8x512xf32>, i32 -> vector<8x512xf32>
    %88 = vector.shape_cast %16 : vector<1x512xi1> to vector<1x512xi1>
    %89 = vector.broadcast %88 : vector<1x512xi1> to vector<8x512xi1>
    %90 = arith.select %89, %87, %19 : vector<8x512xi1>, vector<8x512xf32>
    %c1_i32_25 = arith.constant 1 : i32
    %91 = tpu.dynamic_rotate %75 by %c1_i32_25 dim 1 : vector<8x512xf32>, i32 -> vector<8x512xf32>
    %92 = vector.shape_cast %12 : vector<1x512xi1> to vector<1x512xi1>
    %93 = vector.broadcast %92 : vector<1x512xi1> to vector<8x512xi1>
    %94 = arith.select %93, %91, %19 : vector<8x512xi1>, vector<8x512xf32>
    %95 = tpu.concatenate %90, %94 in 0 : vector<8x512xf32>, vector<8x512xf32> -> vector<16x512xf32>
    %96 = arith.truncf %95 : vector<16x512xf32> to vector<16x512xbf16>
    %c16_26 = arith.constant 16 : index
    %c0_27 = arith.constant 0 : index
    %97 = vector.load %arg6[%c16_26, %c0_27] : memref<80x512xbf16, #tpu.memory_space<vmem>>, vector<16x512xbf16>
    tpu.vector_store %arg6[%c16_26, %c0_27], %96 {strides = array<i32>} : memref<80x512xbf16, #tpu.memory_space<vmem>>, vector<16x512xbf16>,
    %c511_i32_28 = arith.constant 511 : i32
    %98 = tpu.dynamic_rotate %75 by %c511_i32_28 dim 1 : vector<8x512xf32>, i32 -> vector<8x512xf32>
    %99 = vector.shape_cast %14 : vector<1x512xi1> to vector<1x512xi1>
    %100 = vector.broadcast %99 : vector<1x512xi1> to vector<8x512xi1>
    %101 = arith.select %100, %98, %19 : vector<8x512xi1>, vector<8x512xf32>
    %102 = tpu.concatenate %75, %101 in 0 : vector<8x512xf32>, vector<8x512xf32> -> vector<16x512xf32>
    %103 = arith.truncf %102 : vector<16x512xf32> to vector<16x512xbf16>
    %c32_29 = arith.constant 32 : index
    %c0_30 = arith.constant 0 : index
    %104 = vector.load %arg6[%c32_29, %c0_30] : memref<80x512xbf16, #tpu.memory_space<vmem>>, vector<16x512xbf16>
    tpu.vector_store %arg6[%c32_29, %c0_30], %103 {strides = array<i32>} : memref<80x512xbf16, #tpu.memory_space<vmem>>, vector<16x512xbf16>,
    %c497_i32_31 = arith.constant 497 : i32
    %105 = tpu.dynamic_rotate %75 by %c497_i32_31 dim 1 : vector<8x512xf32>, i32 -> vector<8x512xf32>
    %106 = vector.shape_cast %17 : vector<1x512xi1> to vector<1x512xi1>
    %107 = vector.broadcast %106 : vector<1x512xi1> to vector<8x512xi1>
    %108 = arith.select %107, %105, %19 : vector<8x512xi1>, vector<8x512xf32>
    %c496_i32_32 = arith.constant 496 : i32
    %109 = tpu.dynamic_rotate %75 by %c496_i32_32 dim 1 : vector<8x512xf32>, i32 -> vector<8x512xf32>
    %110 = vector.shape_cast %10 : vector<1x512xi1> to vector<1x512xi1>
    %111 = vector.broadcast %110 : vector<1x512xi1> to vector<8x512xi1>
    %112 = arith.select %111, %109, %19 : vector<8x512xi1>, vector<8x512xf32>
    %113 = tpu.concatenate %108, %112 in 0 : vector<8x512xf32>, vector<8x512xf32> -> vector<16x512xf32>
    %114 = arith.truncf %113 : vector<16x512xf32> to vector<16x512xbf16>
    %c48_33 = arith.constant 48 : index
    %c0_34 = arith.constant 0 : index
    %115 = vector.load %arg6[%c48_33, %c0_34] : memref<80x512xbf16, #tpu.memory_space<vmem>>, vector<16x512xbf16>
    tpu.vector_store %arg6[%c48_33, %c0_34], %114 {strides = array<i32>} : memref<80x512xbf16, #tpu.memory_space<vmem>>, vector<16x512xbf16>,
    %c495_i32_35 = arith.constant 495 : i32
    %116 = tpu.dynamic_rotate %75 by %c495_i32_35 dim 1 : vector<8x512xf32>, i32 -> vector<8x512xf32>
    %117 = vector.shape_cast %18 : vector<1x512xi1> to vector<1x512xi1>
    %118 = vector.broadcast %117 : vector<1x512xi1> to vector<8x512xi1>
    %119 = arith.select %118, %116, %19 : vector<8x512xi1>, vector<8x512xf32>
    %120 = tpu.concatenate %119, %19 in 0 : vector<8x512xf32>, vector<8x512xf32> -> vector<16x512xf32>
    %121 = arith.truncf %120 : vector<16x512xf32> to vector<16x512xbf16>
    %c64_36 = arith.constant 64 : index
    %c0_37 = arith.constant 0 : index
    %122 = vector.load %arg6[%c64_36, %c0_37] : memref<80x512xbf16, #tpu.memory_space<vmem>>, vector<16x512xbf16>
    tpu.vector_store %arg6[%c64_36, %c0_37], %121 {strides = array<i32>} : memref<80x512xbf16, #tpu.memory_space<vmem>>, vector<16x512xbf16>,
    %c0_38 = arith.constant 0 : index
    %c0_39 = arith.constant 0 : index
    %123 = vector.load %arg3[%c0_38, %c0_39] : memref<8x80xbf16, #tpu.memory_space<vmem>>, vector<8x80xbf16>
    %c0_40 = arith.constant 0 : index
    %c0_41 = arith.constant 0 : index
    %124 = vector.load %arg6[%c0_40, %c0_41] : memref<80x512xbf16, #tpu.memory_space<vmem>>, vector<80x512xbf16>
    %cst_42 = arith.constant dense<0.000000e+00> : vector<8x512xf32>
    %125 = tpu.matmul %123, %124, %cst_42 {dimension_numbers = #tpu.dot_dimension_numbers<[1], [0], [0], [1], [0, 0, 1, 1], [], []>} : vector<8x80xbf16>, vector<80x512xbf16>, vector<8x512xf32> -> vector<8x512xf32>
    %c0_43 = arith.constant 0 : index
    %c0_44 = arith.constant 0 : index
    %126 = vector.load %arg4[%c0_43, %c0_44] : memref<8x1xf32, #tpu.memory_space<vmem>>, vector<8x1xf32>
    %127 = vector.broadcast %126 : vector<8x1xf32> to vector<8x512xf32>
    %128 = arith.addf %125, %127 : vector<8x512xf32>
    %c0_45 = arith.constant 0 : index
    %c0_46 = arith.constant 0 : index
    %129 = vector.load %arg0[%c0_45, %c0_46] : memref<8x512xf32, #tpu.memory_space<vmem>>, vector<8x512xf32>
    %130 = arith.addf %128, %129 : vector<8x512xf32>
    %cst_47 = arith.constant 0.000000e+00 : f32
    %131 = vector.broadcast %cst_47 : f32 to vector<8x512xf32>
    %132 = arith.maximumf %130, %131 : vector<8x512xf32>
    %c0_48 = arith.constant 0 : index
    %c0_49 = arith.constant 0 : index
    %133 = vector.load %arg5[%c0_48, %c0_49] : memref<8x512xf32, #tpu.memory_space<vmem>>, vector<8x512xf32>
    tpu.vector_store %arg5[%c0_48, %c0_49], %132 {strides = array<i32>} : memref<8x512xf32, #tpu.memory_space<vmem>>, vector<8x512xf32>,
    return
  }
}

</mosaic_0001>

<llo_original>
// kernel: basic_block_forward.1
$region0: #{basic_block_forward.1}
  #allocation0 [shape = 'u32[]', space=smem, size = 0x4, offset = 0x4, fixed_abs, tag = 'smem constant byte address 0x4 - core index']
  #allocation1 [shape = 'u32[144,128]{1,0:T(1,128)}', space=vmem, size = 0x12000, scoped, tag = 'internal scratch']
  #allocation2 [shape = 'bf16[80,512]{1,0:T(16,128)(2,1)}', space=vmem, size = 0x14000, scoped, tag = 'scratch operand']
  %s0 = inlined_call_operand.vmem [shape: f32[8,512], index: 0, kind: input, shape index: {}]
  %s1 = inlined_call_operand.vmem [shape: bf16[8,80], index: 1, kind: input, shape index: {}]
  %s2 = inlined_call_operand.vmem [shape: f32[8,1], index: 2, kind: input, shape index: {}]
  %s3 = inlined_call_operand.vmem [shape: bf16[8,80], index: 3, kind: input, shape index: {}]
  %s4 = inlined_call_operand.vmem [shape: f32[8,1], index: 4, kind: input, shape index: {}]
  %s5 = inlined_call_operand.vmem [shape: f32[8,512], index: 5, kind: output, shape index: {}]
  %s6 = sld [smem:[#allocation0]]
  $region30: #{basic_block_forward.1} parent=0
    _
  %s8 = ssub.s32 1, %s6
  %s9 = scalar_select 0, %s8, %s6
  // Predicated region
  $region2: #{basic_block_forward.1} parent=0 // pred_check
    _
  $region3: #{basic_block_forward.1} parent=0 // pred_check_branch
    %11 = sbr.rel (0) target = $region5
  $region4: #{basic_block_forward.1} parent=0 // pred_region
    _
  $region5: #{basic_block_forward.1} parent=0 // pred_fallthru
    _
  // Predicated region
  $region6: #{basic_block_forward.1} parent=0 // pred_check
    _
  $region7: #{basic_block_forward.1} parent=0 // pred_check_branch
    %13 = sbr.rel (0) target = $region9
  $region8: #{basic_block_forward.1} parent=0 // pred_region
    _
  $region9: #{basic_block_forward.1} parent=0 // pred_fallthru
    _
  // Predicated region
  $region10: #{basic_block_forward.1} parent=0 // pred_check
    _
  $region11: #{basic_block_forward.1} parent=0 // pred_check_branch
    %15 = sbr.rel (0) target = $region13
  $region12: #{basic_block_forward.1} parent=0 // pred_region
    _
  $region13: #{basic_block_forward.1} parent=0 // pred_fallthru
    _
  // Predicated region
  $region14: #{basic_block_forward.1} parent=0 // pred_check
    _
  $region15: #{basic_block_forward.1} parent=0 // pred_check_branch
    %17 = sbr.rel (0) target = $region17
  $region16: #{basic_block_forward.1} parent=0 // pred_region
    _
  $region17: #{basic_block_forward.1} parent=0 // pred_fallthru
    _
  // Predicated region
  $region18: #{basic_block_forward.1} parent=0 // pred_check
    _
  $region19: #{basic_block_forward.1} parent=0 // pred_check_branch
    %19 = sbr.rel (0) target = $region21
  $region20: #{basic_block_forward.1} parent=0 // pred_region
    _
  $region21: #{basic_block_forward.1} parent=0 // pred_fallthru
    _
  %v21 = vlaneseq
  %v22 = vand.u32 %v21, 127
  %v23 = vadd.s32 %v22, 128
  %v24 = vadd.s32 %v22, 256
  %v25 = vadd.s32 %v22, 384
  %v26 = vand.u32 %v22, 15
  %v27 = vand.u32 %v23, 15
  %v28 = vand.u32 %v24, 15
  %v29 = vand.u32 %v25, 15
  %v30 = vshra.s32 %v22, 4
  %v31 = vshra.s32 %v23, 4
  %v32 = vshra.s32 %v24, 4
  %v33 = vshra.s32 %v25, 4
  %v34 = vand.u32 %v30, 15
  %v35 = vand.u32 %v31, 15
  %v36 = vand.u32 %v32, 15
  %v37 = vand.u32 %v33, 15
  %vm38 = vcmp.ge.s32.totalorder %v34, 1
  %vm39 = vcmp.ge.s32.totalorder %v35, 1
  %vm40 = vcmp.ge.s32.totalorder %v36, 1
  %vm41 = vcmp.ge.s32.totalorder %v37, 1
  %vm42 = vcmp.le.s32.totalorder %v34, 14
  %vm43 = vcmp.le.s32.totalorder %v35, 14
  %vm44 = vcmp.le.s32.totalorder %v36, 14
  %vm45 = vcmp.le.s32.totalorder %v37, 14
  %vm46 = vcmp.ge.s32.totalorder %v26, 1
  %vm47 = vcmp.ge.s32.totalorder %v27, 1
  %vm48 = vcmp.ge.s32.totalorder %v28, 1
  %vm49 = vcmp.ge.s32.totalorder %v29, 1
  %vm50 = vcmp.le.s32.totalorder %v26, 14
  %vm51 = vcmp.le.s32.totalorder %v27, 14
  %vm52 = vcmp.le.s32.totalorder %v28, 14
  %vm53 = vcmp.le.s32.totalorder %v29, 14
  %vm54 = vmand %vm38, %vm46
  %vm55 = vmand %vm39, %vm47
  %vm56 = vmand %vm40, %vm48
  %vm57 = vmand %vm41, %vm49
  %vm58 = vmand %vm38, %vm50
  %vm59 = vmand %vm39, %vm51
  %vm60 = vmand %vm40, %vm52
  %vm61 = vmand %vm41, %vm53
  %vm62 = vmand %vm42, %vm46
  %vm63 = vmand %vm43, %vm47
  %vm64 = vmand %vm44, %vm48
  %vm65 = vmand %vm45, %vm49
  %vm66 = vmand %vm42, %vm50
  %vm67 = vmand %vm43, %vm51
  %vm68 = vmand %vm44, %vm52
  %vm69 = vmand %vm45, %vm53
  %v70 = vld [vmem:[%s0] sm:$0xff]
  %v71 = vld [vmem:[%s0 + $0x8] sm:$0xff]
  %v72 = vld [vmem:[%s0 + $0x10] sm:$0xff]
  %v73 = vld [vmem:[%s0 + $0x18] sm:$0xff]
  %74 = vrot.lane.b32.xlu0 %v70, 17
  %v75 = vpop.permute.xlu0 %74
  %76 = vrot.lane.b32.xlu0 %v71, 17
  %v77 = vpop.permute.xlu0 %76
  %78 = vrot.lane.b32.xlu0 %v72, 17
  %v79 = vpop.permute.xlu0 %78
  %80 = vrot.lane.b32.xlu0 %v73, 17
  %v81 = vpop.permute.xlu0 %80
  %vm82 = vcmp.lt.s32.totalorder %v22, 17
  %v83 = vsel %vm82, %v79, %v81
  %v84 = vsel %vm82, %v77, %v79
  %v85 = vsel %vm82, %v75, %v77
  %v86 = vsel %vm82, %v81, %v75
  %v87 = vsel %vm54, 1, 0
  %v88 = vsel %vm55, 1, 0
  %v89 = vsel %vm56, 1, 0
  %v90 = vsel %vm57, 1, 0
  %vm91 = vcmp.eq.s32.totalorder %v87, 1
  %vm92 = vcmp.eq.s32.totalorder %v88, 1
  %vm93 = vcmp.eq.s32.totalorder %v89, 1
  %vm94 = vcmp.eq.s32.totalorder %v90, 1
  %v95 = vsel %vm91, %v86, 0.0
  %v96 = vsel %vm92, %v85, 0.0
  %v97 = vsel %vm93, %v84, 0.0
  %v98 = vsel %vm94, %v83, 0.0
  %99 = vrot.lane.b32.xlu0 %v70, 16
  %v100 = vpop.permute.xlu0 %99
  %101 = vrot.lane.b32.xlu0 %v71, 16
  %v102 = vpop.permute.xlu0 %101
  %103 = vrot.lane.b32.xlu0 %v72, 16
  %v104 = vpop.permute.xlu0 %103
  %105 = vrot.lane.b32.xlu0 %v73, 16
  %v106 = vpop.permute.xlu0 %105
  %vm107 = vcmp.lt.s32.totalorder %v22, 16
  %v108 = vsel %vm107, %v104, %v106
  %v109 = vsel %vm107, %v102, %v104
  %v110 = vsel %vm107, %v100, %v102
  %v111 = vsel %vm107, %v106, %v100
  %v112 = vsel %vm38, 1, 0
  %v113 = vsel %vm39, 1, 0
  %v114 = vsel %vm40, 1, 0
  %v115 = vsel %vm41, 1, 0
  %vm116 = vcmp.eq.s32.totalorder %v112, 1
  %vm117 = vcmp.eq.s32.totalorder %v113, 1
  %vm118 = vcmp.eq.s32.totalorder %v114, 1
  %vm119 = vcmp.eq.s32.totalorder %v115, 1
  %v120 = vsel %vm116, %v111, 0.0
  %v121 = vsel %vm117, %v110, 0.0
  %v122 = vsel %vm118, %v109, 0.0
  %v123 = vsel %vm119, %v108, 0.0
  %v124 = vpack.c.bf16 %v120, %v95
  %v125 = vpack.c.bf16 %v121, %v96
  %v126 = vpack.c.bf16 %v122, %v97
  %v127 = vpack.c.bf16 %v123, %v98
  %128 = vst [vmem:[#allocation2] sm:$0xff] %v124
  %129 = vst [vmem:[#allocation2 + $0x8] sm:$0xff] %v125
  %130 = vst [vmem:[#allocation2 + $0x10] sm:$0xff] %v126
  %131 = vst [vmem:[#allocation2 + $0x18] sm:$0xff] %v127
  %132 = vrot.lane.b32.xlu0 %v70, 15
  %v133 = vpop.permute.xlu0 %132
  %134 = vrot.lane.b32.xlu0 %v71, 15
  %v135 = vpop.permute.xlu0 %134
  %136 = vrot.lane.b32.xlu0 %v72, 15
  %v137 = vpop.permute.xlu0 %136
  %138 = vrot.lane.b32.xlu0 %v73, 15
  %v139 = vpop.permute.xlu0 %138
  %vm140 = vcmp.lt.s32.totalorder %v22, 15
  %v141 = vsel %vm140, %v137, %v139
  %v142 = vsel %vm140, %v135, %v137
  %v143 = vsel %vm140, %v133, %v135
  %v144 = vsel %vm140, %v139, %v133
  %v145 = vsel %vm58, 1, 0
  %v146 = vsel %vm59, 1, 0
  %v147 = vsel %vm60, 1, 0
  %v148 = vsel %vm61, 1, 0
  %vm149 = vcmp.eq.s32.totalorder %v145, 1
  %vm150 = vcmp.eq.s32.totalorder %v146, 1
  %vm151 = vcmp.eq.s32.totalorder %v147, 1
  %vm152 = vcmp.eq.s32.totalorder %v148, 1
  %v153 = vsel %vm149, %v144, 0.0
  %v154 = vsel %vm150, %v143, 0.0
  %v155 = vsel %vm151, %v142, 0.0
  %v156 = vsel %vm152, %v141, 0.0
  %157 = vrot.lane.b32.xlu0 %v70, 1
  %v158 = vpop.permute.xlu0 %157
  %159 = vrot.lane.b32.xlu0 %v71, 1
  %v160 = vpop.permute.xlu0 %159
  %161 = vrot.lane.b32.xlu0 %v72, 1
  %v162 = vpop.permute.xlu0 %161
  %163 = vrot.lane.b32.xlu0 %v73, 1
  %v164 = vpop.permute.xlu0 %163
  %vm165 = vcmp.lt.s32.totalorder %v22, 1
  %v166 = vsel %vm165, %v162, %v164
  %v167 = vsel %vm165, %v160, %v162
  %v168 = vsel %vm165, %v158, %v160
  %v169 = vsel %vm165, %v164, %v158
  %v170 = vsel %vm46, 1, 0
  %v171 = vsel %vm47, 1, 0
  %v172 = vsel %vm48, 1, 0
  %v173 = vsel %vm49, 1, 0
  %vm174 = vcmp.eq.s32.totalorder %v170, 1
  %vm175 = vcmp.eq.s32.totalorder %v171, 1
  %vm176 = vcmp.eq.s32.totalorder %v172, 1
  %vm177 = vcmp.eq.s32.totalorder %v173, 1
  %v178 = vsel %vm174, %v169, 0.0
  %v179 = vsel %vm175, %v168, 0.0
  %v180 = vsel %vm176, %v167, 0.0
  %v181 = vsel %vm177, %v166, 0.0
  %v182 = vpack.c.bf16 %v178, %v153
  %v183 = vpack.c.bf16 %v179, %v154
  %v184 = vpack.c.bf16 %v180, %v155
  %v185 = vpack.c.bf16 %v181, %v156
  %186 = vst [vmem:[#allocation2 + $0x20] sm:$0xff] %v182
  %187 = vst [vmem:[#allocation2 + $0x28] sm:$0xff] %v183
  %188 = vst [vmem:[#allocation2 + $0x30] sm:$0xff] %v184
  %189 = vst [vmem:[#allocation2 + $0x38] sm:$0xff] %v185
  %190 = vrot.lane.b32.xlu0 %v70, 127
  %v191 = vpop.permute.xlu0 %190
  %192 = vrot.lane.b32.xlu0 %v71, 127
  %v193 = vpop.permute.xlu0 %192
  %194 = vrot.lane.b32.xlu0 %v72, 127
  %v195 = vpop.permute.xlu0 %194
  %196 = vrot.lane.b32.xlu0 %v73, 127
  %v197 = vpop.permute.xlu0 %196
  %vm198 = vcmp.lt.s32.totalorder %v22, 127
  %v199 = vsel %vm198, %v195, %v197
  %v200 = vsel %vm198, %v193, %v195
  %v201 = vsel %vm198, %v191, %v193
  %v202 = vsel %vm198, %v197, %v191
  %v203 = vsel %vm50, 1, 0
  %v204 = vsel %vm51, 1, 0
  %v205 = vsel %vm52, 1, 0
  %v206 = vsel %vm53, 1, 0
  %vm207 = vcmp.eq.s32.totalorder %v203, 1
  %vm208 = vcmp.eq.s32.totalorder %v204, 1
  %vm209 = vcmp.eq.s32.totalorder %v205, 1
  %vm210 = vcmp.eq.s32.totalorder %v206, 1
  %v211 = vsel %vm207, %v201, 0.0
  %v212 = vsel %vm208, %v200, 0.0
  %v213 = vsel %vm209, %v199, 0.0
  %v214 = vsel %vm210, %v202, 0.0
  %v215 = vpack.c.bf16 %v211, %v70
  %v216 = vpack.c.bf16 %v212, %v71
  %v217 = vpack.c.bf16 %v213, %v72
  %v218 = vpack.c.bf16 %v214, %v73
  %219 = vst [vmem:[#allocation2 + $0x40] sm:$0xff] %v215
  %220 = vst [vmem:[#allocation2 + $0x48] sm:$0xff] %v216
  %221 = vst [vmem:[#allocation2 + $0x50] sm:$0xff] %v217
  %222 = vst [vmem:[#allocation2 + $0x58] sm:$0xff] %v218
  %223 = vrot.lane.b32.xlu0 %v70, 113
  %v224 = vpop.permute.xlu0 %223
  %225 = vrot.lane.b32.xlu0 %v71, 113
  %v226 = vpop.permute.xlu0 %225
  %227 = vrot.lane.b32.xlu0 %v72, 113
  %v228 = vpop.permute.xlu0 %227
  %229 = vrot.lane.b32.xlu0 %v73, 113
  %v230 = vpop.permute.xlu0 %229
  %vm231 = vcmp.lt.s32.totalorder %v22, 113
  %v232 = vsel %vm231, %v228, %v230
  %v233 = vsel %vm231, %v226, %v228
  %v234 = vsel %vm231, %v224, %v226
  %v235 = vsel %vm231, %v230, %v224
  %v236 = vsel %vm62, 1, 0
  %v237 = vsel %vm63, 1, 0
  %v238 = vsel %vm64, 1, 0
  %v239 = vsel %vm65, 1, 0
  %vm240 = vcmp.eq.s32.totalorder %v236, 1
  %vm241 = vcmp.eq.s32.totalorder %v237, 1
  %vm242 = vcmp.eq.s32.totalorder %v238, 1
  %vm243 = vcmp.eq.s32.totalorder %v239, 1
  %v244 = vsel %vm240, %v234, 0.0
  %v245 = vsel %vm241, %v233, 0.0
  %v246 = vsel %vm242, %v232, 0.0
  %v247 = vsel %vm243, %v235, 0.0
  %248 = vrot.lane.b32.xlu0 %v70, 112
  %v249 = vpop.permute.xlu0 %248
  %250 = vrot.lane.b32.xlu0 %v71, 112
  %v251 = vpop.permute.xlu0 %250
  %252 = vrot.lane.b32.xlu0 %v72, 112
  %v253 = vpop.permute.xlu0 %252
  %254 = vrot.lane.b32.xlu0 %v73, 112
  %v255 = vpop.permute.xlu0 %254
  %vm256 = vcmp.lt.s32.totalorder %v22, 112
  %v257 = vsel %vm256, %v253, %v255
  %v258 = vsel %vm256, %v251, %v253
  %v259 = vsel %vm256, %v249, %v251
  %v260 = vsel %vm256, %v255, %v249
  %v261 = vsel %vm42, 1, 0
  %v262 = vsel %vm43, 1, 0
  %v263 = vsel %vm44, 1, 0
  %v264 = vsel %vm45, 1, 0
  %vm265 = vcmp.eq.s32.totalorder %v261, 1
  %vm266 = vcmp.eq.s32.totalorder %v262, 1
  %vm267 = vcmp.eq.s32.totalorder %v263, 1
  %vm268 = vcmp.eq.s32.totalorder %v264, 1
  %v269 = vsel %vm265, %v259, 0.0
  %v270 = vsel %vm266, %v258, 0.0
  %v271 = vsel %vm267, %v257, 0.0
  %v272 = vsel %vm268, %v260, 0.0
  %v273 = vpack.c.bf16 %v269, %v244
  %v274 = vpack.c.bf16 %v270, %v245
  %v275 = vpack.c.bf16 %v271, %v246
  %v276 = vpack.c.bf16 %v272, %v247
  %277 = vst [vmem:[#allocation2 + $0x60] sm:$0xff] %v273
  %278 = vst [vmem:[#allocation2 + $0x68] sm:$0xff] %v274
  %279 = vst [vmem:[#allocation2 + $0x70] sm:$0xff] %v275
  %280 = vst [vmem:[#allocation2 + $0x78] sm:$0xff] %v276
  %281 = vrot.lane.b32.xlu0 %v70, 111
  %v282 = vpop.permute.xlu0 %281
  %283 = vrot.lane.b32.xlu0 %v71, 111
  %v284 = vpop.permute.xlu0 %283
  %285 = vrot.lane.b32.xlu0 %v72, 111
  %v286 = vpop.permute.xlu0 %285
  %287 = vrot.lane.b32.xlu0 %v73, 111
  %v288 = vpop.permute.xlu0 %287
  %vm289 = vcmp.lt.s32.totalorder %v22, 111
  %v290 = vsel %vm289, %v286, %v288
  %v291 = vsel %vm289, %v284, %v286
  %v292 = vsel %vm289, %v282, %v284
  %v293 = vsel %vm289, %v288, %v282
  %v294 = vsel %vm66, 1, 0
  %v295 = vsel %vm67, 1, 0
  %v296 = vsel %vm68, 1, 0
  %v297 = vsel %vm69, 1, 0
  %vm298 = vcmp.eq.s32.totalorder %v294, 1
  %vm299 = vcmp.eq.s32.totalorder %v295, 1
  %vm300 = vcmp.eq.s32.totalorder %v296, 1
  %vm301 = vcmp.eq.s32.totalorder %v297, 1
  %v302 = vsel %vm298, %v292, 0.0
  %v303 = vsel %vm299, %v291, 0.0
  %v304 = vsel %vm300, %v290, 0.0
  %v305 = vsel %vm301, %v293, 0.0
  %v306 = vpack.c.bf16 0.0, %v302
  %v307 = vpack.c.bf16 0.0, %v303
  %v308 = vpack.c.bf16 0.0, %v304
  %v309 = vpack.c.bf16 0.0, %v305
  %310 = vst [vmem:[#allocation2 + $0x80] sm:$0xff] %v306
  %311 = vst [vmem:[#allocation2 + $0x88] sm:$0xff] %v307
  %312 = vst [vmem:[#allocation2 + $0x90] sm:$0xff] %v308
  %313 = vst [vmem:[#allocation2 + $0x98] sm:$0xff] %v309
  %v314 = vld [vmem:[%s1] sm:$0xf]
  %v315 = vld [vmem:[#allocation2] sm:$0xff]
  %v316 = vld [vmem:[#allocation2 + $0x8] sm:$0xff]
  %v317 = vld [vmem:[#allocation2 + $0x10] sm:$0xff]
  %v318 = vld [vmem:[#allocation2 + $0x18] sm:$0xff]
  %v319 = vld [vmem:[#allocation2 + $0x20] sm:$0xff]
  %v320 = vld [vmem:[#allocation2 + $0x28] sm:$0xff]
  %v321 = vld [vmem:[#allocation2 + $0x30] sm:$0xff]
  %v322 = vld [vmem:[#allocation2 + $0x38] sm:$0xff]
  %v323 = vld [vmem:[#allocation2 + $0x40] sm:$0xff]
  %v324 = vld [vmem:[#allocation2 + $0x48] sm:$0xff]
  %v325 = vld [vmem:[#allocation2 + $0x50] sm:$0xff]
  %v326 = vld [vmem:[#allocation2 + $0x58] sm:$0xff]
  %v327 = vld [vmem:[#allocation2 + $0x60] sm:$0xff]
  %v328 = vld [vmem:[#allocation2 + $0x68] sm:$0xff]
  %v329 = vld [vmem:[#allocation2 + $0x70] sm:$0xff]
  %v330 = vld [vmem:[#allocation2 + $0x78] sm:$0xff]
  %v331 = vld [vmem:[#allocation2 + $0x80] sm:$0xff]
  %v332 = vld [vmem:[#allocation2 + $0x88] sm:$0xff]
  %v333 = vld [vmem:[#allocation2 + $0x90] sm:$0xff]
  %v334 = vld [vmem:[#allocation2 + $0x98] sm:$0xff]
  %v335 = vld [vmem:[%s2] sm:$0xff]
  %337 = vset.pattern.permute.xlu0 0
  %338 = vperm.xlu0 %337, %v335
  %v339 = vpop.permute.xlu0 %338
  %vm341 = vcmask 654336
  %v343 = vsel %vm341, %v314, 0
  %345 = vmatprep.subr.bf16.mxu0 %v316
  %346 = vmatpush1.bf16.msra.mxu0 %v315
  %347 = vmatprep.subr.bf16.mxu0 %v320
  %348 = vmatpush1.bf16.msra.mxu0 %v319
  %349 = vmatprep.subr.bf16.mxu0 %v324
  %350 = vmatpush1.bf16.msra.mxu0 %v323
  %351 = vmatprep.subr.bf16.mxu0 %v328
  %352 = vmatpush1.bf16.msra.mxu0 %v327
  %353 = vmatprep.subr.bf16.mxu0 %v332
  %354 = vmatpush1.bf16.msra.mxu0 %v331
  %355 = vmatprep.subr.bf16.mxu0 0
  %356 = vmatpush1.bf16.msra.mxu0 0
  %357 = vmatprep.subr.bf16.mxu0 0
  %358 = vmatpush1.bf16.msra.mxu0 0
  %359 = vmatprep.subr.bf16.mxu0 0
  %360 = vmatpush1.bf16.msra.mxu0 0
  %361 = vmatprep.subr.bf16.mxu0 0
  %362 = vmatpush1.bf16.msra.mxu0 0
  %363 = vmatprep.subr.bf16.mxu0 0
  %364 = vmatpush1.bf16.msra.mxu0 0
  %365 = vmatprep.subr.bf16.mxu0 0
  %366 = vmatpush1.bf16.msra.mxu0 0
  %367 = vmatprep.subr.bf16.mxu0 0
  %368 = vmatpush1.bf16.msra.mxu0 0
  %369 = vmatprep.subr.bf16.mxu0 0
  %370 = vmatpush1.bf16.msra.mxu0 0
  %371 = vmatprep.subr.bf16.mxu0 0
  %372 = vmatpush1.bf16.msra.mxu0 0
  %373 = vmatprep.subr.bf16.mxu0 0
  %374 = vmatpush1.bf16.msra.mxu0 0
  %375 = vmatprep.subr.bf16.mxu0 0
  %376 = vmatpush1.bf16.msra.mxu0 0
  %377 = vmatprep.mubr.bf16.mxu0 0
  %378 = vmatmul.mubr.bf16.gmra.mrb[0].mxu0 %v343
  %v379 = vpop.f32.mrb[0].mxu0
  %v380 = vadd.f32 %v339, %v379
  %v381 = vpop.f32.mrb[0].mxu0
  %v382 = vadd.f32 %v339, %v381
  %v383 = vpop.f32.mrb[0].mxu0
  %v384 = vpop.f32.mrb[0].mxu0
  %385 = vdwg.mxu0
  %386 = vmatprep.subr.bf16.mxu0 %v318
  %387 = vmatpush1.bf16.msra.mxu0 %v317
  %388 = vmatprep.subr.bf16.mxu0 %v322
  %389 = vmatpush1.bf16.msra.mxu0 %v321
  %390 = vmatprep.subr.bf16.mxu0 %v326
  %391 = vmatpush1.bf16.msra.mxu0 %v325
  %392 = vmatprep.subr.bf16.mxu0 %v330
  %393 = vmatpush1.bf16.msra.mxu0 %v329
  %394 = vmatprep.subr.bf16.mxu0 %v334
  %395 = vmatpush1.bf16.msra.mxu0 %v333
  %396 = vmatprep.subr.bf16.mxu0 0
  %397 = vmatpush1.bf16.msra.mxu0 0
  %398 = vmatprep.subr.bf16.mxu0 0
  %399 = vmatpush1.bf16.msra.mxu0 0
  %400 = vmatprep.subr.bf16.mxu0 0
  %401 = vmatpush1.bf16.msra.mxu0 0
  %402 = vmatprep.subr.bf16.mxu0 0
  %403 = vmatpush1.bf16.msra.mxu0 0
  %404 = vmatprep.subr.bf16.mxu0 0
  %405 = vmatpush1.bf16.msra.mxu0 0
  %406 = vmatprep.subr.bf16.mxu0 0
  %407 = vmatpush1.bf16.msra.mxu0 0
  %408 = vmatprep.subr.bf16.mxu0 0
  %409 = vmatpush1.bf16.msra.mxu0 0
  %410 = vmatprep.subr.bf16.mxu0 0
  %411 = vmatpush1.bf16.msra.mxu0 0
  %412 = vmatprep.subr.bf16.mxu0 0
  %413 = vmatpush1.bf16.msra.mxu0 0
  %414 = vmatprep.subr.bf16.mxu0 0
  %415 = vmatpush1.bf16.msra.mxu0 0
  %416 = vmatprep.subr.bf16.mxu0 0
  %417 = vmatpush1.bf16.msra.mxu0 0
  %418 = vmatprep.mubr.bf16.mxu0 0
  %419 = vmatmul.mubr.bf16.gmra.mrb[0].mxu0 %v343
  %v420 = vpop.f32.mrb[0].mxu0
  %v421 = vadd.f32 %v339, %v420
  %v422 = vpop.f32.mrb[0].mxu0
  %v423 = vadd.f32 %v339, %v422
  %v424 = vpop.f32.mrb[0].mxu0
  %v425 = vpop.f32.mrb[0].mxu0
  %426 = vdwg.mxu0
  %v427 = vmax.f32 %v380, 0.0
  %v428 = vmax.f32 %v382, 0.0
  %v429 = vmax.f32 %v421, 0.0
  %v430 = vmax.f32 %v423, 0.0
  %431 = vrot.lane.b32.xlu0 %v427, 17
  %v432 = vpop.permute.xlu0 %431
  %433 = vrot.lane.b32.xlu0 %v428, 17
  %v434 = vpop.permute.xlu0 %433
  %435 = vrot.lane.b32.xlu0 %v429, 17
  %v436 = vpop.permute.xlu0 %435
  %437 = vrot.lane.b32.xlu0 %v430, 17
  %v438 = vpop.permute.xlu0 %437
  %v439 = vsel %vm82, %v436, %v438
  %v440 = vsel %vm82, %v434, %v436
  %v441 = vsel %vm82, %v432, %v434
  %v442 = vsel %vm82, %v438, %v432
  %v443 = vsel %vm91, %v442, 0.0
  %v444 = vsel %vm92, %v441, 0.0
  %v445 = vsel %vm93, %v440, 0.0
  %v446 = vsel %vm94, %v439, 0.0
  %447 = vrot.lane.b32.xlu0 %v427, 16
  %v448 = vpop.permute.xlu0 %447
  %449 = vrot.lane.b32.xlu0 %v428, 16
  %v450 = vpop.permute.xlu0 %449
  %451 = vrot.lane.b32.xlu0 %v429, 16
  %v452 = vpop.permute.xlu0 %451
  %453 = vrot.lane.b32.xlu0 %v430, 16
  %v454 = vpop.permute.xlu0 %453
  %v455 = vsel %vm107, %v452, %v454
  %v456 = vsel %vm107, %v450, %v452
  %v457 = vsel %vm107, %v448, %v450
  %v458 = vsel %vm107, %v454, %v448
  %v459 = vsel %vm116, %v458, 0.0
  %v460 = vsel %vm117, %v457, 0.0
  %v461 = vsel %vm118, %v456, 0.0
  %v462 = vsel %vm119, %v455, 0.0
  %v463 = vpack.c.bf16 %v459, %v443
  %v464 = vpack.c.bf16 %v460, %v444
  %v465 = vpack.c.bf16 %v461, %v445
  %v466 = vpack.c.bf16 %v462, %v446
  %467 = vst [vmem:[#allocation2] sm:$0xff] %v463
  %468 = vst [vmem:[#allocation2 + $0x8] sm:$0xff] %v464
  %469 = vst [vmem:[#allocation2 + $0x10] sm:$0xff] %v465
  %470 = vst [vmem:[#allocation2 + $0x18] sm:$0xff] %v466
  %471 = vrot.lane.b32.xlu0 %v427, 15
  %v472 = vpop.permute.xlu0 %471
  %473 = vrot.lane.b32.xlu0 %v428, 15
  %v474 = vpop.permute.xlu0 %473
  %475 = vrot.lane.b32.xlu0 %v429, 15
  %v476 = vpop.permute.xlu0 %475
  %477 = vrot.lane.b32.xlu0 %v430, 15
  %v478 = vpop.permute.xlu0 %477
  %v479 = vsel %vm140, %v476, %v478
  %v480 = vsel %vm140, %v474, %v476
  %v481 = vsel %vm140, %v472, %v474
  %v482 = vsel %vm140, %v478, %v472
  %v483 = vsel %vm149, %v482, 0.0
  %v484 = vsel %vm150, %v481, 0.0
  %v485 = vsel %vm151, %v480, 0.0
  %v486 = vsel %vm152, %v479, 0.0
  %487 = vrot.lane.b32.xlu0 %v427, 1
  %v488 = vpop.permute.xlu0 %487
  %489 = vrot.lane.b32.xlu0 %v428, 1
  %v490 = vpop.permute.xlu0 %489
  %491 = vrot.lane.b32.xlu0 %v429, 1
  %v492 = vpop.permute.xlu0 %491
  %493 = vrot.lane.b32.xlu0 %v430, 1
  %v494 = vpop.permute.xlu0 %493
  %v495 = vsel %vm165, %v492, %v494
  %v496 = vsel %vm165, %v490, %v492
  %v497 = vsel %vm165, %v488, %v490
  %v498 = vsel %vm165, %v494, %v488
  %v499 = vsel %vm174, %v498, 0.0
  %v500 = vsel %vm175, %v497, 0.0
  %v501 = vsel %vm176, %v496, 0.0
  %v502 = vsel %vm177, %v495, 0.0
  %v503 = vpack.c.bf16 %v499, %v483
  %v504 = vpack.c.bf16 %v500, %v484
  %v505 = vpack.c.bf16 %v501, %v485
  %v506 = vpack.c.bf16 %v502, %v486
  %507 = vst [vmem:[#allocation2 + $0x20] sm:$0xff] %v503
  %508 = vst [vmem:[#allocation2 + $0x28] sm:$0xff] %v504
  %509 = vst [vmem:[#allocation2 + $0x30] sm:$0xff] %v505
  %510 = vst [vmem:[#allocation2 + $0x38] sm:$0xff] %v506
  %511 = vrot.lane.b32.xlu0 %v427, 127
  %v512 = vpop.permute.xlu0 %511
  %513 = vrot.lane.b32.xlu0 %v428, 127
  %v514 = vpop.permute.xlu0 %513
  %515 = vrot.lane.b32.xlu0 %v429, 127
  %v516 = vpop.permute.xlu0 %515
  %517 = vrot.lane.b32.xlu0 %v430, 127
  %v518 = vpop.permute.xlu0 %517
  %v519 = vsel %vm198, %v516, %v518
  %v520 = vsel %vm198, %v514, %v516
  %v521 = vsel %vm198, %v512, %v514
  %v522 = vsel %vm198, %v518, %v512
  %v523 = vsel %vm207, %v521, 0.0
  %v524 = vsel %vm208, %v520, 0.0
  %v525 = vsel %vm209, %v519, 0.0
  %v526 = vsel %vm210, %v522, 0.0
  %v527 = vpack.c.bf16 %v523, %v427
  %v528 = vpack.c.bf16 %v524, %v428
  %v529 = vpack.c.bf16 %v525, %v429
  %v530 = vpack.c.bf16 %v526, %v430
  %531 = vst [vmem:[#allocation2 + $0x40] sm:$0xff] %v527
  %532 = vst [vmem:[#allocation2 + $0x48] sm:$0xff] %v528
  %533 = vst [vmem:[#allocation2 + $0x50] sm:$0xff] %v529
  %534 = vst [vmem:[#allocation2 + $0x58] sm:$0xff] %v530
  %535 = vrot.lane.b32.xlu0 %v427, 113
  %v536 = vpop.permute.xlu0 %535
  %537 = vrot.lane.b32.xlu0 %v428, 113
  %v538 = vpop.permute.xlu0 %537
  %539 = vrot.lane.b32.xlu0 %v429, 113
  %v540 = vpop.permute.xlu0 %539
  %541 = vrot.lane.b32.xlu0 %v430, 113
  %v542 = vpop.permute.xlu0 %541
  %v543 = vsel %vm231, %v540, %v542
  %v544 = vsel %vm231, %v538, %v540
  %v545 = vsel %vm231, %v536, %v538
  %v546 = vsel %vm231, %v542, %v536
  %v547 = vsel %vm240, %v545, 0.0
  %v548 = vsel %vm241, %v544, 0.0
  %v549 = vsel %vm242, %v543, 0.0
  %v550 = vsel %vm243, %v546, 0.0
  %551 = vrot.lane.b32.xlu0 %v427, 112
  %v552 = vpop.permute.xlu0 %551
  %553 = vrot.lane.b32.xlu0 %v428, 112
  %v554 = vpop.permute.xlu0 %553
  %555 = vrot.lane.b32.xlu0 %v429, 112
  %v556 = vpop.permute.xlu0 %555
  %557 = vrot.lane.b32.xlu0 %v430, 112
  %v558 = vpop.permute.xlu0 %557
  %v559 = vsel %vm256, %v556, %v558
  %v560 = vsel %vm256, %v554, %v556
  %v561 = vsel %vm256, %v552, %v554
  %v562 = vsel %vm256, %v558, %v552
  %v563 = vsel %vm265, %v561, 0.0
  %v564 = vsel %vm266, %v560, 0.0
  %v565 = vsel %vm267, %v559, 0.0
  %v566 = vsel %vm268, %v562, 0.0
  %v567 = vpack.c.bf16 %v563, %v547
  %v568 = vpack.c.bf16 %v564, %v548
  %v569 = vpack.c.bf16 %v565, %v549
  %v570 = vpack.c.bf16 %v566, %v550
  %571 = vst [vmem:[#allocation2 + $0x60] sm:$0xff] %v567
  %572 = vst [vmem:[#allocation2 + $0x68] sm:$0xff] %v568
  %573 = vst [vmem:[#allocation2 + $0x70] sm:$0xff] %v569
  %574 = vst [vmem:[#allocation2 + $0x78] sm:$0xff] %v570
  %575 = vrot.lane.b32.xlu0 %v427, 111
  %v576 = vpop.permute.xlu0 %575
  %577 = vrot.lane.b32.xlu0 %v428, 111
  %v578 = vpop.permute.xlu0 %577
  %579 = vrot.lane.b32.xlu0 %v429, 111
  %v580 = vpop.permute.xlu0 %579
  %581 = vrot.lane.b32.xlu0 %v430, 111
  %v582 = vpop.permute.xlu0 %581
  %v583 = vsel %vm289, %v580, %v582
  %v584 = vsel %vm289, %v578, %v580
  %v585 = vsel %vm289, %v576, %v578
  %v586 = vsel %vm289, %v582, %v576
  %v587 = vsel %vm298, %v585, 0.0
  %v588 = vsel %vm299, %v584, 0.0
  %v589 = vsel %vm300, %v583, 0.0
  %v590 = vsel %vm301, %v586, 0.0
  %v591 = vpack.c.bf16 0.0, %v587
  %v592 = vpack.c.bf16 0.0, %v588
  %v593 = vpack.c.bf16 0.0, %v589
  %v594 = vpack.c.bf16 0.0, %v590
  %595 = vst [vmem:[#allocation2 + $0x80] sm:$0xff] %v591
  %596 = vst [vmem:[#allocation2 + $0x88] sm:$0xff] %v592
  %597 = vst [vmem:[#allocation2 + $0x90] sm:$0xff] %v593
  %598 = vst [vmem:[#allocation2 + $0x98] sm:$0xff] %v594
  %v599 = vld [vmem:[%s3] sm:$0xf]
  %v600 = vld [vmem:[#allocation2] sm:$0xff]
  %v601 = vld [vmem:[#allocation2 + $0x8] sm:$0xff]
  %v602 = vld [vmem:[#allocation2 + $0x10] sm:$0xff]
  %v603 = vld [vmem:[#allocation2 + $0x18] sm:$0xff]
  %v604 = vld [vmem:[#allocation2 + $0x20] sm:$0xff]
  %v605 = vld [vmem:[#allocation2 + $0x28] sm:$0xff]
  %v606 = vld [vmem:[#allocation2 + $0x30] sm:$0xff]
  %v607 = vld [vmem:[#allocation2 + $0x38] sm:$0xff]
  %v608 = vld [vmem:[#allocation2 + $0x40] sm:$0xff]
  %v609 = vld [vmem:[#allocation2 + $0x48] sm:$0xff]
  %v610 = vld [vmem:[#allocation2 + $0x50] sm:$0xff]
  %v611 = vld [vmem:[#allocation2 + $0x58] sm:$0xff]
  %v612 = vld [vmem:[#allocation2 + $0x60] sm:$0xff]
  %v613 = vld [vmem:[#allocation2 + $0x68] sm:$0xff]
  %v614 = vld [vmem:[#allocation2 + $0x70] sm:$0xff]
  %v615 = vld [vmem:[#allocation2 + $0x78] sm:$0xff]
  %v616 = vld [vmem:[#allocation2 + $0x80] sm:$0xff]
  %v617 = vld [vmem:[#allocation2 + $0x88] sm:$0xff]
  %v618 = vld [vmem:[#allocation2 + $0x90] sm:$0xff]
  %v619 = vld [vmem:[#allocation2 + $0x98] sm:$0xff]
  %v620 = vld [vmem:[%s4] sm:$0xff]
  %622 = vset.pattern.permute.xlu0 0
  %623 = vperm.xlu0 %622, %v620
  %v624 = vpop.permute.xlu0 %623
  %v627 = vsel %vm341, %v599, 0
  %629 = vmatprep.subr.bf16.mxu0 %v601
  %630 = vmatpush1.bf16.msra.mxu0 %v600
  %631 = vmatprep.subr.bf16.mxu0 %v605
  %632 = vmatpush1.bf16.msra.mxu0 %v604
  %633 = vmatprep.subr.bf16.mxu0 %v609
  %634 = vmatpush1.bf16.msra.mxu0 %v608
  %635 = vmatprep.subr.bf16.mxu0 %v613
  %636 = vmatpush1.bf16.msra.mxu0 %v612
  %637 = vmatprep.subr.bf16.mxu0 %v617
  %638 = vmatpush1.bf16.msra.mxu0 %v616
  %639 = vmatprep.subr.bf16.mxu0 0
  %640 = vmatpush1.bf16.msra.mxu0 0
  %641 = vmatprep.subr.bf16.mxu0 0
  %642 = vmatpush1.bf16.msra.mxu0 0
  %643 = vmatprep.subr.bf16.mxu0 0
  %644 = vmatpush1.bf16.msra.mxu0 0
  %645 = vmatprep.subr.bf16.mxu0 0
  %646 = vmatpush1.bf16.msra.mxu0 0
  %647 = vmatprep.subr.bf16.mxu0 0
  %648 = vmatpush1.bf16.msra.mxu0 0
  %649 = vmatprep.subr.bf16.mxu0 0
  %650 = vmatpush1.bf16.msra.mxu0 0
  %651 = vmatprep.subr.bf16.mxu0 0
  %652 = vmatpush1.bf16.msra.mxu0 0
  %653 = vmatprep.subr.bf16.mxu0 0
  %654 = vmatpush1.bf16.msra.mxu0 0
  %655 = vmatprep.subr.bf16.mxu0 0
  %656 = vmatpush1.bf16.msra.mxu0 0
  %657 = vmatprep.subr.bf16.mxu0 0
  %658 = vmatpush1.bf16.msra.mxu0 0
  %659 = vmatprep.subr.bf16.mxu0 0
  %660 = vmatpush1.bf16.msra.mxu0 0
  %661 = vmatprep.mubr.bf16.mxu0 0
  %662 = vmatmul.mubr.bf16.gmra.mrb[0].mxu0 %v627
  %v663 = vpop.f32.mrb[0].mxu0
  %v664 = vadd.f32 %v624, %v663
  %v665 = vpop.f32.mrb[0].mxu0
  %v666 = vadd.f32 %v624, %v665
  %v667 = vpop.f32.mrb[0].mxu0
  %v668 = vpop.f32.mrb[0].mxu0
  %669 = vdwg.mxu0
  %670 = vmatprep.subr.bf16.mxu0 %v603
  %671 = vmatpush1.bf16.msra.mxu0 %v602
  %672 = vmatprep.subr.bf16.mxu0 %v607
  %673 = vmatpush1.bf16.msra.mxu0 %v606
  %674 = vmatprep.subr.bf16.mxu0 %v611
  %675 = vmatpush1.bf16.msra.mxu0 %v610
  %676 = vmatprep.subr.bf16.mxu0 %v615
  %677 = vmatpush1.bf16.msra.mxu0 %v614
  %678 = vmatprep.subr.bf16.mxu0 %v619
  %679 = vmatpush1.bf16.msra.mxu0 %v618
  %680 = vmatprep.subr.bf16.mxu0 0
  %681 = vmatpush1.bf16.msra.mxu0 0
  %682 = vmatprep.subr.bf16.mxu0 0
  %683 = vmatpush1.bf16.msra.mxu0 0
  %684 = vmatprep.subr.bf16.mxu0 0
  %685 = vmatpush1.bf16.msra.mxu0 0
  %686 = vmatprep.subr.bf16.mxu0 0
  %687 = vmatpush1.bf16.msra.mxu0 0
  %688 = vmatprep.subr.bf16.mxu0 0
  %689 = vmatpush1.bf16.msra.mxu0 0
  %690 = vmatprep.subr.bf16.mxu0 0
  %691 = vmatpush1.bf16.msra.mxu0 0
  %692 = vmatprep.subr.bf16.mxu0 0
  %693 = vmatpush1.bf16.msra.mxu0 0
  %694 = vmatprep.subr.bf16.mxu0 0
  %695 = vmatpush1.bf16.msra.mxu0 0
  %696 = vmatprep.subr.bf16.mxu0 0
  %697 = vmatpush1.bf16.msra.mxu0 0
  %698 = vmatprep.subr.bf16.mxu0 0
  %699 = vmatpush1.bf16.msra.mxu0 0
  %700 = vmatprep.subr.bf16.mxu0 0
  %701 = vmatpush1.bf16.msra.mxu0 0
  %702 = vmatprep.mubr.bf16.mxu0 0
  %703 = vmatmul.mubr.bf16.gmra.mrb[0].mxu0 %v627
  %v704 = vpop.f32.mrb[0].mxu0
  %v705 = vadd.f32 %v624, %v704
  %v706 = vpop.f32.mrb[0].mxu0
  %v707 = vadd.f32 %v624, %v706
  %v708 = vpop.f32.mrb[0].mxu0
  %v709 = vpop.f32.mrb[0].mxu0
  %710 = vdwg.mxu0
  %v711 = vld [vmem:[%s0] sm:$0xff]
  %v712 = vld [vmem:[%s0 + $0x8] sm:$0xff]
  %v713 = vld [vmem:[%s0 + $0x10] sm:$0xff]
  %v714 = vld [vmem:[%s0 + $0x18] sm:$0xff]
  %v715 = vadd.f32 %v664, %v711
  %v716 = vadd.f32 %v666, %v712
  %v717 = vadd.f32 %v705, %v713
  %v718 = vadd.f32 %v707, %v714
  %v719 = vmax.f32 %v715, 0.0
  %v720 = vmax.f32 %v716, 0.0
  %v721 = vmax.f32 %v717, 0.0
  %v722 = vmax.f32 %v718, 0.0
  %723 = vst [vmem:[%s5] sm:$0xff] %v719
  %724 = vst [vmem:[%s5 + $0x8] sm:$0xff] %v720
  %725 = vst [vmem:[%s5 + $0x10] sm:$0xff] %v721
  %726 = vst [vmem:[%s5 + $0x18] sm:$0xff] %v722
  // Predicated region
  $region22: #{basic_block_forward.1} parent=0 // pred_check
    _
  $region23: #{basic_block_forward.1} parent=0 // pred_check_branch
    %728 = sbr.rel (0) target = $region25
  $region24: #{basic_block_forward.1} parent=0 // pred_region
    _
  $region25: #{basic_block_forward.1} parent=0 // pred_fallthru
    _
  // Predicated region
  $region26: #{basic_block_forward.1} parent=0 // pred_check
    _
  $region27: #{basic_block_forward.1} parent=0 // pred_check_branch
    %730 = sbr.rel (0) target = $region29
  $region28: #{basic_block_forward.1} parent=0 // pred_region
    _
  $region29: #{basic_block_forward.1} parent=0 // pred_fallthru
    _

</llo_original>
